<compile_context>
chip_gen: v5e
topology: v5e:2x2
jax: 0.10.0
libtpu: 0.0.40
codegen_flags: <defaults>
</compile_context>

<pallas_src>
import functools

import jax
import jax.numpy as jnp
from jax.experimental import pallas as pl
from jax.experimental.pallas import tpu as pltpu

EPS = 1e-5  # nn.InstanceNorm2d default


def _conv_relu_norm_kernel(x_ref, w_ref, b_ref, mask_ref, o_ref, r_ref,
                           *, k, wp, inv_hw):
    # x_ref:    (1, Cin, Lin)    zero-padded sample, spatial dims flattened
    # w_ref:    (Cout, k*k*Cin)  folded weights (tap-major, Cin minor)
    # b_ref:    (Cout, 1)        conv bias
    # mask_ref: (1, L)           1.0 on valid columns, 0.0 on pad columns
    # o_ref:    (1, Cout, L)     L = H * Wp (pad columns hold don't-care data)
    # r_ref:    (k*k*Cin, L)     im2col scratch in the input dtype
    cin = x_ref.shape[1]
    L = o_ref.shape[2]

    # Build the im2col matrix: tap t is a lane-shifted view of the flat input.
    for t in range(k * k):
        ky, kx = divmod(t, k)
        r_ref[pl.ds(t * cin, cin), :] = x_ref[0, :, pl.ds(ky * wp + kx, L)]

    # Single MXU contraction over all taps and input channels
    # (operands in native dtype, f32 accumulation).
    acc = jnp.dot(w_ref[...], r_ref[...], preferred_element_type=jnp.float32)

    # bias + ReLU
    acc = jnp.maximum(acc + b_ref[...].astype(jnp.float32), 0.0)

    # InstanceNorm2d over the H*W valid positions (single pass: sum & sum-sq).
    m = mask_ref[...].astype(jnp.float32)                           # (1, L)
    z = acc * m
    mean = jnp.sum(z, axis=1, keepdims=True) * inv_hw               # (Cout, 1)
    var = jnp.sum(z * z, axis=1, keepdims=True) * inv_hw - mean * mean
    scale = jax.lax.rsqrt(jnp.maximum(var, 0.0) + EPS)              # EUP rsqrt
    o_ref[0] = (acc * scale - mean * scale).astype(o_ref.dtype)


def conv_relu_norm(x_nchw, w_oihw, bias):
    """x_nchw: (N, Cin, H, W); w_oihw: (Cout, Cin, k, k); bias: (Cout,)."""
    N, Cin, H, W = x_nchw.shape
    Cout, Cin2, k, k2 = w_oihw.shape
    assert Cin == Cin2 and k == k2
    assert k % 2 == 1, "same-padded conv assumes an odd kernel size"
    pad = k // 2

    Wp = W + 2 * pad            # padded width
    Hpe = H + 2 * pad + 1       # padded height + 1 spare row so every shifted
                                # flattened slice stays in bounds
    L = H * Wp                  # flattened (lane-dense) per-channel length
    Lin = Hpe * Wp
    kk = k * k

    # Single zero-pad pass, no transpose; the reshape is a free view.
    x_pad = jnp.pad(x_nchw, ((0, 0), (0, 0), (pad, pad + 1), (pad, pad)))
    x_flat = x_pad.reshape(N, Cin, Lin)

    # Fold the k*k taps into one (Cout, k*k*Cin) weight matrix (tap-major).
    w2 = jnp.transpose(w_oihw, (0, 2, 3, 1)).reshape(Cout, kk * Cin)
    b2 = bias.reshape(Cout, 1)

    # 1/0 mask marking the W valid columns inside each padded row of length Wp.
    mask = jnp.tile(jnp.arange(Wp) < W, H).astype(jnp.float32).reshape(1, L)

    kernel = functools.partial(_conv_relu_norm_kernel,
                               k=k, wp=Wp, inv_hw=1.0 / float(H * W))

    itemsize = jnp.dtype(x_nchw.dtype).itemsize
    w_itemsize = jnp.dtype(w2.dtype).itemsize
    vmem_needed = (2 * Cin * Lin * itemsize              # double-buffered input
                   + 2 * Cout * L * itemsize             # double-buffered output
                   + 2 * (Cout * kk * Cin + Cout) * w_itemsize
                   + 2 * L * 4                           # mask
                   + kk * Cin * L * itemsize             # im2col scratch
                   + 8 * Cout * L * 4)                   # f32 epilogue temps
    vmem_limit = int(min(max(2 * vmem_needed, 4 << 20), 64 << 20))

    cost = pl.CostEstimate(
        flops=2 * N * H * W * kk * Cin * Cout + 6 * N * Cout * L,
        transcendentals=N * Cout,
        bytes_accessed=(x_flat.size * itemsize
                        + (w2.size + b2.size) * w_itemsize
                        + mask.size * 4
                        + N * Cout * L * itemsize))

    out_flat = pl.pallas_call(
        kernel,
        out_shape=jax.ShapeDtypeStruct((N, Cout, L), x_nchw.dtype),
        grid_spec=pltpu.PrefetchScalarGridSpec(
            num_scalar_prefetch=0,
            grid=(N,),
            in_specs=[
                pl.BlockSpec((1, Cin, Lin), lambda n: (n, 0, 0)),
                pl.BlockSpec((Cout, kk * Cin), lambda n: (0, 0)),
                pl.BlockSpec((Cout, 1), lambda n: (0, 0)),
                pl.BlockSpec((1, L), lambda n: (0, 0)),
            ],
            out_specs=pl.BlockSpec((1, Cout, L), lambda n: (n, 0, 0)),
            scratch_shapes=[pltpu.VMEM((kk * Cin, L), x_nchw.dtype)],
        ),
        compiler_params=pltpu.CompilerParams(
            dimension_semantics=("parallel",),
            vmem_limit_bytes=vmem_limit),
        cost_estimate=cost,
    )(x_flat, w2, b2, mask)

    # Drop the pad columns and recover NCHW (reshape is free; slice is tiny).
    return out_flat.reshape(N, Cout, H, Wp)[:, :, :, :W]


def _reference(x_nchw, w_oihw, bias):
    """Pure-JAX reference matching PyTorch semantics (sanity check)."""
    pad = w_oihw.shape[-1] // 2
    y = jax.lax.conv_general_dilated(
        x_nchw.astype(jnp.float32), w_oihw.astype(jnp.float32),
        window_strides=(1, 1), padding=[(pad, pad), (pad, pad)],
        dimension_numbers=("NCHW", "OIHW", "NCHW"))
    y = y + bias.astype(jnp.float32).reshape(1, -1, 1, 1)
    y = jnp.maximum(y, 0.0)
    mean = jnp.mean(y, axis=(2, 3), keepdims=True)
    var = jnp.mean((y - mean) ** 2, axis=(2, 3), keepdims=True)
    return ((y - mean) * jax.lax.rsqrt(var + EPS)).astype(x_nchw.dtype)


if __name__ == "__main__":
    # small shapes consistent with ConvReluNorm(h=4, k=3) on a (2,4,16,16) input
    N, C, H, W, K = 2, 4, 16, 16, 3

    key = jax.random.PRNGKey(0)
    kx_, kw_, kb_ = jax.random.split(key, 3)
    x = jax.random.normal(kx_, (N, C, H, W), dtype=jnp.float32)
    # deterministic, nn.Conv2d-like init scale
    fan_in = C * K * K
    bound = 1.0 / (fan_in ** 0.5)
    w = jax.random.uniform(kw_, (C, C, K, K), jnp.float32, -bound, bound)
    b = jax.random.uniform(kb_, (C,), jnp.float32, -bound, bound)

    out = conv_relu_norm(x, w, b)
    jax.block_until_ready(out)

    ref = _reference(x, w, b)
    assert out.shape == (N, C, H, W)
    assert jnp.allclose(out, ref, atol=2e-4, rtol=2e-4), "mismatch vs reference"

    print("KERNEL_OK")
</pallas_src>

<mosaic_0001>
module attributes {stable_mosaic.version = 11 : i64} {
  func.func @_conv_relu_norm_kernel(%arg0: i32, %arg1: memref<1x4x342xf32, #tpu.memory_space<vmem>>, %arg2: memref<4x36xf32, #tpu.memory_space<vmem>>, %arg3: memref<4x1xf32, #tpu.memory_space<vmem>>, %arg4: memref<1x288xf32, #tpu.memory_space<vmem>>, %arg5: memref<1x4x288xf32, #tpu.memory_space<vmem>>, %arg6: memref<36x288xf32, #tpu.memory_space<vmem>>) attributes {dimension_semantics = [#tpu.dimension_semantics<parallel>], iteration_bounds = array<i64: 2>, scalar_prefetch = 0 : i64, scratch_operands = 1 : i64, tpu.core_type = #tpu.core_type<tc>, window_params = [{transform_indices = @transform_0, window_bounds = array<i64: 1, 4, 342>}, {pipeline_mode = #tpu.pipeline_mode<synchronous>, transform_indices = @transform_1, window_bounds = array<i64: 4, 36>}, {pipeline_mode = #tpu.pipeline_mode<synchronous>, transform_indices = @transform_2, window_bounds = array<i64: 4, 1>}, {pipeline_mode = #tpu.pipeline_mode<synchronous>, transform_indices = @transform_3, window_bounds = array<i64: 1, 288>}, {transform_indices = @transform_4, window_bounds = array<i64: 1, 4, 288>}]} {
    %c0 = arith.constant 0 : index
    %c0_0 = arith.constant 0 : index
    %c0_1 = arith.constant 0 : index
    %0 = vector.load %arg1[%c0, %c0_0, %c0_1] : memref<1x4x342xf32, #tpu.memory_space<vmem>>, vector<1x4x288xf32>
    %1 = vector.shape_cast %0 : vector<1x4x288xf32> to vector<4x288xf32>
    %c0_2 = arith.constant 0 : index
    %c0_3 = arith.constant 0 : index
    %2 = vector.load %arg6[%c0_2, %c0_3] : memref<36x288xf32, #tpu.memory_space<vmem>>, vector<4x288xf32>
    tpu.vector_store %arg6[%c0_2, %c0_3], %1 {strides = array<i32>} : memref<36x288xf32, #tpu.memory_space<vmem>>, vector<4x288xf32>,
    %c0_4 = arith.constant 0 : index
    %c0_5 = arith.constant 0 : index
    %c1 = arith.constant 1 : index
    %3 = vector.load %arg1[%c0_4, %c0_5, %c1] : memref<1x4x342xf32, #tpu.memory_space<vmem>>, vector<1x4x288xf32>
    %4 = vector.shape_cast %3 : vector<1x4x288xf32> to vector<4x288xf32>
    %c4 = arith.constant 4 : index
    %c0_6 = arith.constant 0 : index
    %5 = vector.load %arg6[%c4, %c0_6] : memref<36x288xf32, #tpu.memory_space<vmem>>, vector<4x288xf32>
    tpu.vector_store %arg6[%c4, %c0_6], %4 {strides = array<i32>} : memref<36x288xf32, #tpu.memory_space<vmem>>, vector<4x288xf32>,
    %c0_7 = arith.constant 0 : index
    %c0_8 = arith.constant 0 : index
    %c2 = arith.constant 2 : index
    %6 = vector.load %arg1[%c0_7, %c0_8, %c2] : memref<1x4x342xf32, #tpu.memory_space<vmem>>, vector<1x4x288xf32>
    %7 = vector.shape_cast %6 : vector<1x4x288xf32> to vector<4x288xf32>
    %c8 = arith.constant 8 : index
    %c0_9 = arith.constant 0 : index
    %8 = vector.load %arg6[%c8, %c0_9] : memref<36x288xf32, #tpu.memory_space<vmem>>, vector<4x288xf32>
    tpu.vector_store %arg6[%c8, %c0_9], %7 {strides = array<i32>} : memref<36x288xf32, #tpu.memory_space<vmem>>, vector<4x288xf32>,
    %c0_10 = arith.constant 0 : index
    %c0_11 = arith.constant 0 : index
    %c18 = arith.constant 18 : index
    %9 = vector.load %arg1[%c0_10, %c0_11, %c18] : memref<1x4x342xf32, #tpu.memory_space<vmem>>, vector<1x4x288xf32>
    %10 = vector.shape_cast %9 : vector<1x4x288xf32> to vector<4x288xf32>
    %c12 = arith.constant 12 : index
    %c0_12 = arith.constant 0 : index
    %11 = vector.load %arg6[%c12, %c0_12] : memref<36x288xf32, #tpu.memory_space<vmem>>, vector<4x288xf32>
    tpu.vector_store %arg6[%c12, %c0_12], %10 {strides = array<i32>} : memref<36x288xf32, #tpu.memory_space<vmem>>, vector<4x288xf32>,
    %c0_13 = arith.constant 0 : index
    %c0_14 = arith.constant 0 : index
    %c19 = arith.constant 19 : index
    %12 = vector.load %arg1[%c0_13, %c0_14, %c19] : memref<1x4x342xf32, #tpu.memory_space<vmem>>, vector<1x4x288xf32>
    %13 = vector.shape_cast %12 : vector<1x4x288xf32> to vector<4x288xf32>
    %c16 = arith.constant 16 : index
    %c0_15 = arith.constant 0 : index
    %14 = vector.load %arg6[%c16, %c0_15] : memref<36x288xf32, #tpu.memory_space<vmem>>, vector<4x288xf32>
    tpu.vector_store %arg6[%c16, %c0_15], %13 {strides = array<i32>} : memref<36x288xf32, #tpu.memory_space<vmem>>, vector<4x288xf32>,
    %c0_16 = arith.constant 0 : index
    %c0_17 = arith.constant 0 : index
    %c20 = arith.constant 20 : index
    %15 = vector.load %arg1[%c0_16, %c0_17, %c20] : memref<1x4x342xf32, #tpu.memory_space<vmem>>, vector<1x4x288xf32>
    %16 = vector.shape_cast %15 : vector<1x4x288xf32> to vector<4x288xf32>
    %c20_18 = arith.constant 20 : index
    %c0_19 = arith.constant 0 : index
    %17 = vector.load %arg6[%c20_18, %c0_19] : memref<36x288xf32, #tpu.memory_space<vmem>>, vector<4x288xf32>
    tpu.vector_store %arg6[%c20_18, %c0_19], %16 {strides = array<i32>} : memref<36x288xf32, #tpu.memory_space<vmem>>, vector<4x288xf32>,
    %c0_20 = arith.constant 0 : index
    %c0_21 = arith.constant 0 : index
    %c36 = arith.constant 36 : index
    %18 = vector.load %arg1[%c0_20, %c0_21, %c36] : memref<1x4x342xf32, #tpu.memory_space<vmem>>, vector<1x4x288xf32>
    %19 = vector.shape_cast %18 : vector<1x4x288xf32> to vector<4x288xf32>
    %c24 = arith.constant 24 : index
    %c0_22 = arith.constant 0 : index
    %20 = vector.load %arg6[%c24, %c0_22] : memref<36x288xf32, #tpu.memory_space<vmem>>, vector<4x288xf32>
    tpu.vector_store %arg6[%c24, %c0_22], %19 {strides = array<i32>} : memref<36x288xf32, #tpu.memory_space<vmem>>, vector<4x288xf32>,
    %c0_23 = arith.constant 0 : index
    %c0_24 = arith.constant 0 : index
    %c37 = arith.constant 37 : index
    %21 = vector.load %arg1[%c0_23, %c0_24, %c37] : memref<1x4x342xf32, #tpu.memory_space<vmem>>, vector<1x4x288xf32>
    %22 = vector.shape_cast %21 : vector<1x4x288xf32> to vector<4x288xf32>
    %c28 = arith.constant 28 : index
    %c0_25 = arith.constant 0 : index
    %23 = vector.load %arg6[%c28, %c0_25] : memref<36x288xf32, #tpu.memory_space<vmem>>, vector<4x288xf32>
    tpu.vector_store %arg6[%c28, %c0_25], %22 {strides = array<i32>} : memref<36x288xf32, #tpu.memory_space<vmem>>, vector<4x288xf32>,
    %c0_26 = arith.constant 0 : index
    %c0_27 = arith.constant 0 : index
    %c38 = arith.constant 38 : index
    %24 = vector.load %arg1[%c0_26, %c0_27, %c38] : memref<1x4x342xf32, #tpu.memory_space<vmem>>, vector<1x4x288xf32>
    %25 = vector.shape_cast %24 : vector<1x4x288xf32> to vector<4x288xf32>
    %c32 = arith.constant 32 : index
    %c0_28 = arith.constant 0 : index
    %26 = vector.load %arg6[%c32, %c0_28] : memref<36x288xf32, #tpu.memory_space<vmem>>, vector<4x288xf32>
    tpu.vector_store %arg6[%c32, %c0_28], %25 {strides = array<i32>} : memref<36x288xf32, #tpu.memory_space<vmem>>, vector<4x288xf32>,
    %c0_29 = arith.constant 0 : index
    %c0_30 = arith.constant 0 : index
    %27 = vector.load %arg2[%c0_29, %c0_30] : memref<4x36xf32, #tpu.memory_space<vmem>>, vector<4x36xf32>
    %c0_31 = arith.constant 0 : index
    %c0_32 = arith.constant 0 : index
    %28 = vector.load %arg6[%c0_31, %c0_32] : memref<36x288xf32, #tpu.memory_space<vmem>>, vector<36x288xf32>
    %cst = arith.constant dense<0.000000e+00> : vector<4x288xf32>
    %29 = tpu.matmul %27, %28, %cst {dimension_numbers = #tpu.dot_dimension_numbers<[1], [0], [0], [1], [0, 0, 1, 1], [], []>} : vector<4x36xf32>, vector<36x288xf32>, vector<4x288xf32> -> vector<4x288xf32>
    %c0_33 = arith.constant 0 : index
    %c0_34 = arith.constant 0 : index
    %30 = vector.load %arg3[%c0_33, %c0_34] : memref<4x1xf32, #tpu.memory_space<vmem>>, vector<4x1xf32>
    %31 = vector.broadcast %30 : vector<4x1xf32> to vector<4x288xf32>
    %32 = arith.addf %29, %31 : vector<4x288xf32>
    %cst_35 = arith.constant 0.000000e+00 : f32
    %33 = vector.broadcast %cst_35 : f32 to vector<4x288xf32>
    %34 = arith.maximumf %32, %33 : vector<4x288xf32>
    %c0_36 = arith.constant 0 : index
    %c0_37 = arith.constant 0 : index
    %35 = vector.load %arg4[%c0_36, %c0_37] : memref<1x288xf32, #tpu.memory_space<vmem>>, vector<1x288xf32>
    %36 = vector.broadcast %35 : vector<1x288xf32> to vector<4x288xf32>
    %37 = arith.mulf %34, %36 : vector<4x288xf32>
    %cst_38 = arith.constant dense<0.000000e+00> : vector<4xf32>
    %38 = vector.multi_reduction <add>, %37, %cst_38 [1] : vector<4x288xf32> to vector<4xf32>
    %39 = vector.shape_cast %38 : vector<4xf32> to vector<4x1xf32>
    %cst_39 = arith.constant 3.906250e-03 : f32
    %40 = vector.broadcast %cst_39 : f32 to vector<4x1xf32>
    %41 = arith.mulf %39, %40 : vector<4x1xf32>
    %42 = arith.mulf %37, %37 : vector<4x288xf32>
    %cst_40 = arith.constant dense<0.000000e+00> : vector<4xf32>
    %43 = vector.multi_reduction <add>, %42, %cst_40 [1] : vector<4x288xf32> to vector<4xf32>
    %44 = vector.shape_cast %43 : vector<4xf32> to vector<4x1xf32>
    %cst_41 = arith.constant 3.906250e-03 : f32
    %45 = vector.broadcast %cst_41 : f32 to vector<4x1xf32>
    %46 = arith.mulf %44, %45 : vector<4x1xf32>
    %47 = arith.mulf %41, %41 : vector<4x1xf32>
    %48 = arith.subf %46, %47 : vector<4x1xf32>
    %cst_42 = arith.constant 0.000000e+00 : f32
    %49 = vector.broadcast %cst_42 : f32 to vector<4x1xf32>
    %50 = arith.maximumf %48, %49 : vector<4x1xf32>
    %cst_43 = arith.constant 9.99999974E-6 : f32
    %51 = vector.broadcast %cst_43 : f32 to vector<4x1xf32>
    %52 = arith.addf %50, %51 : vector<4x1xf32>
    %53 = math.rsqrt %52 : vector<4x1xf32>
    %54 = vector.broadcast %53 : vector<4x1xf32> to vector<4x288xf32>
    %55 = arith.mulf %34, %54 : vector<4x288xf32>
    %56 = arith.mulf %41, %53 : vector<4x1xf32>
    %57 = vector.broadcast %56 : vector<4x1xf32> to vector<4x288xf32>
    %58 = arith.subf %55, %57 : vector<4x288xf32>
    %c0_44 = arith.constant 0 : index
    %c0_45 = arith.constant 0 : index
    %c0_46 = arith.constant 0 : index
    %59 = vector.load %arg5[%c0_44, %c0_45, %c0_46] : memref<1x4x288xf32, #tpu.memory_space<vmem>>, vector<1x4x288xf32>
    %60 = vector.shape_cast %59 : vector<1x4x288xf32> to vector<4x288xf32>
    %61 = vector.shape_cast %58 : vector<4x288xf32> to vector<1x4x288xf32>
    tpu.vector_store %arg5[%c0_44, %c0_45, %c0_46], %61 {strides = array<i32>} : memref<1x4x288xf32, #tpu.memory_space<vmem>>, vector<1x4x288xf32>,
    return
  }
  func.func @transform_0(%arg0: i32) -> (i32, i32, i32) {
    %c0_i32 = arith.constant 0 : i32
    %c0_i32_0 = arith.constant 0 : i32
    %c0_i32_1 = arith.constant 0 : i32
    return %arg0, %c0_i32, %c0_i32_0 : i32, i32, i32
  }
  func.func @transform_1(%arg0: i32) -> (i32, i32) {
    %c0_i32 = arith.constant 0 : i32
    %c0_i32_0 = arith.constant 0 : i32
    %c0_i32_1 = arith.constant 0 : i32
    return %c0_i32, %c0_i32_0 : i32, i32
  }
  func.func @transform_2(%arg0: i32) -> (i32, i32) {
    %c0_i32 = arith.constant 0 : i32
    %c0_i32_0 = arith.constant 0 : i32
    %c0_i32_1 = arith.constant 0 : i32
    return %c0_i32, %c0_i32_0 : i32, i32
  }
  func.func @transform_3(%arg0: i32) -> (i32, i32) {
    %c0_i32 = arith.constant 0 : i32
    %c0_i32_0 = arith.constant 0 : i32
    %c0_i32_1 = arith.constant 0 : i32
    return %c0_i32, %c0_i32_0 : i32, i32
  }
  func.func @transform_4(%arg0: i32) -> (i32, i32, i32) {
    %c0_i32 = arith.constant 0 : i32
    %c0_i32_0 = arith.constant 0 : i32
    %c0_i32_1 = arith.constant 0 : i32
    return %arg0, %c0_i32, %c0_i32_0 : i32, i32, i32
  }
}

</mosaic_0001>

<llo_original>
// kernel: tpu_custom_call.1
$region0: #{tpu_custom_call.1}
  #allocation0 [shape = 'u32[]', space=smem, size = 0x4, offset = 0x4, fixed_abs, tag = 'smem constant byte address 0x4 - core index']
  #allocation1 [shape = 'u32[72,128]{1,0:T(1,128)}', space=vmem, size = 0x9000, scoped, tag = 'internal scratch']
  #allocation2 [shape = 'f32[36,288]{1,0:T(8,128)}', space=vmem, size = 0xf000, scoped, tag = 'scratch operand']
  %s0 = inlined_call_operand.hbm [shape: f32[2,4,342], index: 0, kind: input, shape index: {}]
  %s1 = inlined_call_operand.vmem [shape: f32[4,36], index: 1, kind: input, shape index: {}]
  %s2 = inlined_call_operand.vmem [shape: f32[4,1], index: 2, kind: input, shape index: {}]
  %s3 = inlined_call_operand.vmem [shape: f32[1,288], index: 3, kind: input, shape index: {}]
  %s4 = inlined_call_operand.hbm [shape: f32[2,4,288], index: 4, kind: output, shape index: {}]
  %s5 = sld [smem:[#allocation0]]
  $region53: #{tpu_custom_call.1} parent=0
    _
  %s7 = ssub.s32 1, %s5
  %s8 = scalar_select 0, %s7, %s5
  $region1: #{tpu_custom_call.1} parent=0
    #allocation3 [shape = 'u8[12288]{0}', space=vmem, size = 0x3000, scoped, tag = 'input window, operand 0']
    #allocation4 [shape = 's32[2]{0}', space=sflag, size = 0x8, scoped, tag = 'scoped memory for tpu_custom_call.1']
    #allocation5 [shape = 's32[2]{0}', space=sflag, size = 0x8, scoped, tag = 'scoped memory for tpu_custom_call.1']
    #allocation6 [shape = 'u8[12288]{0}', space=vmem, size = 0x3000, scoped, tag = 'output window, operand 0']
    %9 = vsyncpa [#allocation4], 0
    %s10 = scalar_lea.sflag [#allocation4], 1
    %11 = vsyncpa %s10, 0
    %12 = vsyncpa [#allocation5], 0
    %s13 = scalar_lea.sflag [#allocation5], 1
    %14 = vsyncpa %s13, 0
    loop: start=0, step=1, limit=4
    $region2: #{tpu_custom_call.1} parent=1 // loop_pre_header
      _
    $region3: #{tpu_custom_call.1} parent=1 // loop_header
      %s16 = sphi 0, %s20
      %p17 = scmp.ge.s32.totalorder %s16, 4
      %s26 = sphi 0, %s28
      %s29 = sphi 0, %s26
      %s30 = sphi 0, %s29
      %s46 = sphi 0, %s30
      %s50 = sphi 0, %s50
      %s52 = sphi 0, %s50
      %s53 = sphi 0, %s52
      %s67 = sphi 0, %s53
      %s71 = sphi 0, %s71
      %s73 = sphi 0, %s71
      %s74 = sphi 0, %s73
      %s88 = sphi 0, %s74
      %s92 = sphi 0, %s92
      %s94 = sphi 0, %s92
      %s95 = sphi 0, %s94
      %s109 = sphi 0, %s95
      %s115 = sphi 0, %s117
      %s118 = sphi 0, %s115
      %s119 = sphi 0, %s118
      %s135 = sphi 0, %s119
    $region4: #{tpu_custom_call.1} parent=1 // loop_header_branch
      %19 = sbr.rel (%p17) target = $region8
    $region5: #{tpu_custom_call.1} parent=1 // loop_body
      %s21 = ssub.s32 %s16, 1
      %s22 = ssub.s32 %s16, 2
      %s23 = sadd.s32 %s16, 1
      %s24 = ssub.s32 %s16, %s23
      %p25 = scmp.eq.s32.totalorder %s24, 0
      %s27 = sadd.s32 %s26, 1
      %s28 = scalar_select %p25, %s26, %s27
      %p31 = pneg %p25
      %p32 = scmp.eq.s32.totalorder %s16, 1
      %p33 = por %p31, %p32
      %p34 = scmp.ne.s32.totalorder %s26, %s29
      %p35 = scmp.eq.s32.totalorder %s16, 0
      %p36 = por %p34, %p35
      %p37 = scmp.ne.s32.totalorder %s26, %s29
      %p38 = scmp.eq.s32.totalorder %s21, 1
      %p39 = por %p37, %p38
      %p40 = scmp.ne.s32.totalorder %s29, %s30
      %p41 = scmp.eq.s32.totalorder %s21, 0
      %p42 = por %p40, %p41
      %p43 = scmp.ne.s32.totalorder %s29, %s30
      %p44 = scmp.eq.s32.totalorder %s22, 1
      %p45 = por %p43, %p44
      %p47 = scmp.ne.s32.totalorder %s30, %s46
      %p48 = scmp.eq.s32.totalorder %s22, 0
      %p49 = por %p47, %p48
      %s51 = sadd.s32 %s50, 1
      %p54 = scmp.eq.s32.totalorder %s16, 1
      %p55 = scmp.ne.s32.totalorder %s50, %s52
      %p56 = scmp.eq.s32.totalorder %s16, 0
      %p57 = por %p55, %p56
      %p58 = scmp.ne.s32.totalorder %s50, %s52
      %p59 = scmp.eq.s32.totalorder %s21, 1
      %p60 = por %p58, %p59
      %p61 = scmp.ne.s32.totalorder %s52, %s53
      %p62 = scmp.eq.s32.totalorder %s21, 0
      %p63 = por %p61, %p62
      %p64 = scmp.ne.s32.totalorder %s52, %s53
      %p65 = scmp.eq.s32.totalorder %s22, 1
      %p66 = por %p64, %p65
      %p68 = scmp.ne.s32.totalorder %s53, %s67
      %p69 = scmp.eq.s32.totalorder %s22, 0
      %p70 = por %p68, %p69
      %s72 = sadd.s32 %s71, 1
      %p75 = scmp.eq.s32.totalorder %s16, 1
      %p76 = scmp.ne.s32.totalorder %s71, %s73
      %p77 = scmp.eq.s32.totalorder %s16, 0
      %p78 = por %p76, %p77
      %p79 = scmp.ne.s32.totalorder %s71, %s73
      %p80 = scmp.eq.s32.totalorder %s21, 1
      %p81 = por %p79, %p80
      %p82 = scmp.ne.s32.totalorder %s73, %s74
      %p83 = scmp.eq.s32.totalorder %s21, 0
      %p84 = por %p82, %p83
      %p85 = scmp.ne.s32.totalorder %s73, %s74
      %p86 = scmp.eq.s32.totalorder %s22, 1
      %p87 = por %p85, %p86
      %p89 = scmp.ne.s32.totalorder %s74, %s88
      %p90 = scmp.eq.s32.totalorder %s22, 0
      %p91 = por %p89, %p90
      %s93 = sadd.s32 %s92, 1
      %p96 = scmp.eq.s32.totalorder %s16, 1
      %p97 = scmp.ne.s32.totalorder %s92, %s94
      %p98 = scmp.eq.s32.totalorder %s16, 0
      %p99 = por %p97, %p98
      %p100 = scmp.ne.s32.totalorder %s92, %s94
      %p101 = scmp.eq.s32.totalorder %s21, 1
      %p102 = por %p100, %p101
      %p103 = scmp.ne.s32.totalorder %s94, %s95
      %p104 = scmp.eq.s32.totalorder %s21, 0
      %p105 = por %p103, %p104
      %p106 = scmp.ne.s32.totalorder %s94, %s95
      %p107 = scmp.eq.s32.totalorder %s22, 1
      %p108 = por %p106, %p107
      %p110 = scmp.ne.s32.totalorder %s95, %s109
      %p111 = scmp.eq.s32.totalorder %s22, 0
      %p112 = por %p110, %p111
      %s113 = ssub.s32 %s16, %s23
      %p114 = scmp.eq.s32.totalorder %s113, 0
      %s116 = sadd.s32 %s115, 1
      %s117 = scalar_select %p114, %s115, %s116
      %p120 = pneg %p114
      %p121 = scmp.eq.s32.totalorder %s16, 1
      %p122 = por %p120, %p121
      %p123 = scmp.ne.s32.totalorder %s115, %s118
      %p124 = scmp.eq.s32.totalorder %s16, 0
      %p125 = por %p123, %p124
      %p126 = scmp.ne.s32.totalorder %s115, %s118
      %p127 = scmp.eq.s32.totalorder %s21, 1
      %p128 = por %p126, %p127
      %p129 = scmp.ne.s32.totalorder %s118, %s119
      %p130 = scmp.eq.s32.totalorder %s21, 0
      %p131 = por %p129, %p130
      %p132 = scmp.ne.s32.totalorder %s118, %s119
      %p133 = scmp.eq.s32.totalorder %s22, 1
      %p134 = por %p132, %p133
      %p136 = scmp.ne.s32.totalorder %s119, %s135
      %p137 = scmp.eq.s32.totalorder %s22, 0
      %p138 = por %p136, %p137
      %p139 = scmp.le.s32.totalorder 1, %s16
      %p140 = scmp.lt.s32.totalorder %s16, 3
      %p141 = pnand %p139, %p140
      %p142 = pneg %p141
      // Predicated region
      $region9: #{tpu_custom_call.1} parent=5 // pred_check
        _
      $region10: #{tpu_custom_call.1} parent=5 // pred_check_branch
        %144 = sbr.rel (%p141) target = $region12
      $region11: #{tpu_custom_call.1} parent=5 // pred_region
        %s145 = ssub.s32 %s16, 1
        // Predicated region
        $region13: #{tpu_custom_call.1} parent=11 // pred_check
          %p146 = pneg %p63
        $region14: #{tpu_custom_call.1} parent=11 // pred_check_branch
          %148 = sbr.rel (%p146) target = $region16
        $region15: #{tpu_custom_call.1} parent=11 // pred_region
          _
        $region16: #{tpu_custom_call.1} parent=11 // pred_fallthru
          _
        // Predicated region
        $region17: #{tpu_custom_call.1} parent=11 // pred_check
          %p149 = pneg %p84
        $region18: #{tpu_custom_call.1} parent=11 // pred_check_branch
          %151 = sbr.rel (%p149) target = $region20
        $region19: #{tpu_custom_call.1} parent=11 // pred_region
          _
        $region20: #{tpu_custom_call.1} parent=11 // pred_fallthru
          _
        // Predicated region
        $region21: #{tpu_custom_call.1} parent=11 // pred_check
          %p152 = pneg %p105
        $region22: #{tpu_custom_call.1} parent=11 // pred_check_branch
          %154 = sbr.rel (%p152) target = $region24
        $region23: #{tpu_custom_call.1} parent=11 // pred_region
          _
        $region24: #{tpu_custom_call.1} parent=11 // pred_fallthru
          _
      $region12: #{tpu_custom_call.1} parent=5 // pred_fallthru
        _
      %p155 = scmp.lt.s32.totalorder %s16, 2
      // Predicated region
      $region25: #{tpu_custom_call.1} parent=5 // pred_check
        %p156 = pneg %p155
      $region26: #{tpu_custom_call.1} parent=5 // pred_check_branch
        %158 = sbr.rel (%p156) target = $region28
      $region27: #{tpu_custom_call.1} parent=5 // pred_region
        // Predicated region
        $region29: #{tpu_custom_call.1} parent=27 // pred_check
          %p159 = pneg %p36
        $region30: #{tpu_custom_call.1} parent=27 // pred_check_branch
          %161 = sbr.rel (%p159) target = $region32
        $region31: #{tpu_custom_call.1} parent=27 // pred_region
          %s162 = sand.u32 %s26, 1
          %s163 = scalar_lea.sflag [#allocation4], %s162
          %s164 = sand.u32 %s26, 1
          %s165 = smul.addr %s164, 12
          %s166 = scalar_lea.vmem [#allocation3], %s165
          %168 = vsyncadd %s163, 0
          %s169 = smul.addr %s16, 3
          %s170 = smul.addr %s169, 4
          %s171 = scalar_lea.hbm %s0, %s170
          %s173 = sshll.u32 %s171, 4
          %s174 = int_to_ptr.hbm [resolvable:$true] %s173
          %s175 = sshll.u32 %s166, 4
          %s176 = int_to_ptr.vmem [resolvable:$true] %s175
          %178 = dma.hbm_to_vmem [thread:$0]  %s174, 192, %s176, %s163
        $region32: #{tpu_custom_call.1} parent=27 // pred_fallthru
          _
      $region28: #{tpu_custom_call.1} parent=5 // pred_fallthru
        _
      %p179 = scmp.le.s32.totalorder 1, %s16
      %p180 = scmp.lt.s32.totalorder %s16, 3
      %p181 = pnand %p179, %p180
      %p182 = pneg %p181
      // Predicated region
      $region33: #{tpu_custom_call.1} parent=5 // pred_check
        _
      $region34: #{tpu_custom_call.1} parent=5 // pred_check_branch
        %184 = sbr.rel (%p181) target = $region36
      $region35: #{tpu_custom_call.1} parent=5 // pred_region
        %s185 = ssub.s32 %s16, 1
        %s186 = sand.u32 %s29, 1
        %s187 = scalar_lea.sflag [#allocation4], %s186
        %s188 = sand.u32 %s29, 1
        %s189 = smul.addr %s188, 12
        %s190 = scalar_lea.vmem [#allocation3], %s189
        // Predicated region
        $region37: #{tpu_custom_call.1} parent=35 // pred_check
          %p191 = pneg %p42
        $region38: #{tpu_custom_call.1} parent=35 // pred_check_branch
          %193 = sbr.rel (%p191) target = $region40
        $region39: #{tpu_custom_call.1} parent=35 // pred_region
          %195 = dma.done %s187, 192
        $region40: #{tpu_custom_call.1} parent=35 // pred_fallthru
          _
        %s196 = sand.u32 %s29, 1
        %s197 = scalar_lea.sflag [#allocation4], %s196
        %s198 = sand.u32 %s29, 1
        %s199 = smul.addr %s198, 12
        %s200 = scalar_lea.vmem [#allocation3], %s199
        %p201 = pneg %p42
        %p202 = pneg %p39
        %p203 = pneg %p63
        %p204 = pneg %p60
        %p205 = pneg %p84
        %p206 = pneg %p81
        %p207 = pneg %p105
        %p208 = pneg %p102
        %p209 = pneg %p131
        %p210 = pneg %p128
        %s211 = sand.u32 %s118, 1
        %s212 = scalar_lea.sflag [#allocation5], %s211
        %s213 = sand.u32 %s118, 1
        %s214 = smul.addr %s213, 12
        %s215 = scalar_lea.vmem [#allocation6], %s214
        %v216 = vld [vmem:[%s190] sm:$0xff]
        %v217 = vld [vmem:[%s190 + $0x8] sm:$0xf]
        %220 = vst [vmem:[#allocation1] ss:$2 sm:$0xff] %v216
        %s221 = scalar_lea.vmem [#allocation1], 16
        %222 = vst [vmem:[%s221] ss:$2 sm:$0xff] %v217
        %v223 = vld.sshfl [vmem:[#allocation1] sm:$0xff pattern:$0x75316420]
        %v224 = vld.sshfl [vmem:[#allocation1 + $0x8] sm:$0xff pattern:$0x75316420]
        %v225 = vld.sshfl [vmem:[#allocation1 + $0x10] sm:$0xff pattern:$0x75316420]
        %229 = vst [vmem:[#allocation2] sm:$0xf] %v223
        %230 = vst [vmem:[#allocation2 + $0x8] sm:$0xf] %v224
        %vm231 = vcmask 257024
        %232 = vst.msk [vmem:[#allocation2 + $0x10] sm:$0xf] %vm231, %v225
        %v233 = vld [vmem:[%s190] sm:$0xff]
        %v234 = vld [vmem:[%s190 + $0x8] sm:$0xf]
        %s237 = scalar_lea.vmem [#allocation1], 1
        %238 = vst [vmem:[%s237] ss:$2 sm:$0xff] %v233
        %s239 = scalar_lea.vmem [#allocation1], 17
        %240 = vst [vmem:[%s239] ss:$2 sm:$0xff] %v234
        %v241 = vld.sshfl [vmem:[#allocation1] sm:$0xff pattern:$0x75316420]
        %v242 = vld.sshfl [vmem:[#allocation1 + $0x8] sm:$0xff pattern:$0x75316420]
        %v243 = vld.sshfl [vmem:[#allocation1 + $0x10] sm:$0xff pattern:$0x75316420]
        %244 = vrot.lane.b32.xlu0 %v241, 127
        %v245 = vpop.permute.xlu0 %244
        %246 = vrot.lane.b32.xlu0 %v242, 127
        %v247 = vpop.permute.xlu0 %246
        %248 = vrot.lane.b32.xlu0 %v243, 127
        %v249 = vpop.permute.xlu0 %248
        %vm250 = vcmask 1039360
        %v251 = vsel %vm250, %v245, %v247
        %v252 = vsel %vm250, %v247, %v249
        %256 = vst [vmem:[#allocation2] sm:$0xf0] %v251
        %257 = vst [vmem:[#allocation2 + $0x8] sm:$0xf0] %v252
        %vm258 = vcmask 261124
        %259 = vst.msk [vmem:[#allocation2 + $0x10] sm:$0xf0] %vm258, %v249
        %v260 = vld [vmem:[%s190] sm:$0xff]
        %v261 = vld [vmem:[%s190 + $0x8] sm:$0xf]
        %264 = vst [vmem:[#allocation1] ss:$2 sm:$0xff] %v260
        %s265 = scalar_lea.vmem [#allocation1], 16
        %266 = vst [vmem:[%s265] ss:$2 sm:$0xff] %v261
        %v267 = vld.sshfl [vmem:[#allocation1] sm:$0xff pattern:$0x75316420]
        %v268 = vld.sshfl [vmem:[#allocation1 + $0x8] sm:$0xff pattern:$0x75316420]
        %v269 = vld.sshfl [vmem:[#allocation1 + $0x10] sm:$0xff pattern:$0x75316420]
        %270 = vrot.lane.b32.xlu0 %v267, 126
        %v271 = vpop.permute.xlu0 %270
        %272 = vrot.lane.b32.xlu0 %v268, 126
        %v273 = vpop.permute.xlu0 %272
        %274 = vrot.lane.b32.xlu0 %v269, 126
        %v275 = vpop.permute.xlu0 %274
        %vm276 = vcmask 1031168
        %v277 = vsel %vm276, %v271, %v273
        %v278 = vsel %vm276, %v273, %v275
        %282 = vst [vmem:[#allocation2 + $0x18] sm:$0xf] %v277
        %283 = vst [vmem:[#allocation2 + $0x20] sm:$0xf] %v278
        %284 = vst.msk [vmem:[#allocation2 + $0x28] sm:$0xf] %vm231, %v275
        %v285 = vld [vmem:[%s190] sm:$0xff]
        %v286 = vld [vmem:[%s190 + $0x8] sm:$0xf]
        %s289 = scalar_lea.vmem [#allocation1], 1
        %290 = vst [vmem:[%s289] ss:$2 sm:$0xff] %v285
        %s291 = scalar_lea.vmem [#allocation1], 17
        %292 = vst [vmem:[%s291] ss:$2 sm:$0xff] %v286
        %v293 = vld.sshfl [vmem:[#allocation1] sm:$0xff pattern:$0x75316420]
        %v294 = vld.sshfl [vmem:[#allocation1 + $0x8] sm:$0xff pattern:$0x75316420]
        %v295 = vld.sshfl [vmem:[#allocation1 + $0x10] sm:$0xff pattern:$0x75316420]
        %296 = vrot.lane.b32.xlu0 %v293, 110
        %v297 = vpop.permute.xlu0 %296
        %298 = vrot.lane.b32.xlu0 %v294, 110
        %v299 = vpop.permute.xlu0 %298
        %300 = vrot.lane.b32.xlu0 %v295, 110
        %v301 = vpop.permute.xlu0 %300
        %vm302 = vcmask 900096
        %v303 = vsel %vm302, %v297, %v299
        %v304 = vsel %vm302, %v299, %v301
        %308 = vst [vmem:[#allocation2 + $0x18] sm:$0xf0] %v303
        %309 = vst [vmem:[#allocation2 + $0x20] sm:$0xf0] %v304
        %310 = vst.msk [vmem:[#allocation2 + $0x28] sm:$0xf0] %vm258, %v301
        %v311 = vld [vmem:[%s190] sm:$0xff]
        %v312 = vld [vmem:[%s190 + $0x8] sm:$0xf]
        %315 = vst [vmem:[#allocation1] ss:$2 sm:$0xff] %v311
        %s316 = scalar_lea.vmem [#allocation1], 16
        %317 = vst [vmem:[%s316] ss:$2 sm:$0xff] %v312
        %v318 = vld.sshfl [vmem:[#allocation1] sm:$0xff pattern:$0x75316420]
        %v319 = vld.sshfl [vmem:[#allocation1 + $0x8] sm:$0xff pattern:$0x75316420]
        %v320 = vld.sshfl [vmem:[#allocation1 + $0x10] sm:$0xff pattern:$0x75316420]
        %321 = vrot.lane.b32.xlu0 %v318, 109
        %v322 = vpop.permute.xlu0 %321
        %323 = vrot.lane.b32.xlu0 %v319, 109
        %v324 = vpop.permute.xlu0 %323
        %325 = vrot.lane.b32.xlu0 %v320, 109
        %v326 = vpop.permute.xlu0 %325
        %vm327 = vcmask 891904
        %v328 = vsel %vm327, %v322, %v324
        %v329 = vsel %vm327, %v324, %v326
        %333 = vst [vmem:[#allocation2 + $0x30] sm:$0xf] %v328
        %334 = vst [vmem:[#allocation2 + $0x38] sm:$0xf] %v329
        %335 = vst.msk [vmem:[#allocation2 + $0x40] sm:$0xf] %vm231, %v326
        %v336 = vld [vmem:[%s190] sm:$0xff]
        %v337 = vld [vmem:[%s190 + $0x8] sm:$0xf]
        %s340 = scalar_lea.vmem [#allocation1], 1
        %341 = vst [vmem:[%s340] ss:$2 sm:$0xff] %v336
        %s342 = scalar_lea.vmem [#allocation1], 17
        %343 = vst [vmem:[%s342] ss:$2 sm:$0xff] %v337
        %v344 = vld.sshfl [vmem:[#allocation1] sm:$0xff pattern:$0x75316420]
        %v345 = vld.sshfl [vmem:[#allocation1 + $0x8] sm:$0xff pattern:$0x75316420]
        %v346 = vld.sshfl [vmem:[#allocation1 + $0x10] sm:$0xff pattern:$0x75316420]
        %347 = vrot.lane.b32.xlu0 %v344, 108
        %v348 = vpop.permute.xlu0 %347
        %349 = vrot.lane.b32.xlu0 %v345, 108
        %v350 = vpop.permute.xlu0 %349
        %351 = vrot.lane.b32.xlu0 %v346, 108
        %v352 = vpop.permute.xlu0 %351
        %vm353 = vcmask 883712
        %v354 = vsel %vm353, %v348, %v350
        %v355 = vsel %vm353, %v350, %v352
        %359 = vst [vmem:[#allocation2 + $0x30] sm:$0xf0] %v354
        %360 = vst [vmem:[#allocation2 + $0x38] sm:$0xf0] %v355
        %361 = vst.msk [vmem:[#allocation2 + $0x40] sm:$0xf0] %vm258, %v352
        %v362 = vld [vmem:[%s190] sm:$0xff]
        %v363 = vld [vmem:[%s190 + $0x8] sm:$0xf]
        %366 = vst [vmem:[#allocation1] ss:$2 sm:$0xff] %v362
        %s367 = scalar_lea.vmem [#allocation1], 16
        %368 = vst [vmem:[%s367] ss:$2 sm:$0xff] %v363
        %v369 = vld.sshfl [vmem:[#allocation1] sm:$0xff pattern:$0x75316420]
        %v370 = vld.sshfl [vmem:[#allocation1 + $0x8] sm:$0xff pattern:$0x75316420]
        %v371 = vld.sshfl [vmem:[#allocation1 + $0x10] sm:$0xff pattern:$0x75316420]
        %372 = vrot.lane.b32.xlu0 %v369, 92
        %v373 = vpop.permute.xlu0 %372
        %374 = vrot.lane.b32.xlu0 %v370, 92
        %v375 = vpop.permute.xlu0 %374
        %376 = vrot.lane.b32.xlu0 %v371, 92
        %v377 = vpop.permute.xlu0 %376
        %vm378 = vcmask 752640
        %v379 = vsel %vm378, %v373, %v375
        %v380 = vsel %vm378, %v375, %v377
        %384 = vst [vmem:[#allocation2 + $0x48] sm:$0xf] %v379
        %385 = vst [vmem:[#allocation2 + $0x50] sm:$0xf] %v380
        %386 = vst.msk [vmem:[#allocation2 + $0x58] sm:$0xf] %vm231, %v377
        %v387 = vld [vmem:[%s190] sm:$0xff]
        %v388 = vld [vmem:[%s190 + $0x8] sm:$0xf]
        %s391 = scalar_lea.vmem [#allocation1], 1
        %392 = vst [vmem:[%s391] ss:$2 sm:$0xff] %v387
        %s393 = scalar_lea.vmem [#allocation1], 17
        %394 = vst [vmem:[%s393] ss:$2 sm:$0xff] %v388
        %v395 = vld.sshfl [vmem:[#allocation1] sm:$0xff pattern:$0x75316420]
        %v396 = vld.sshfl [vmem:[#allocation1 + $0x8] sm:$0xff pattern:$0x75316420]
        %v397 = vld.sshfl [vmem:[#allocation1 + $0x10] sm:$0xff pattern:$0x75316420]
        %398 = vrot.lane.b32.xlu0 %v395, 91
        %v399 = vpop.permute.xlu0 %398
        %400 = vrot.lane.b32.xlu0 %v396, 91
        %v401 = vpop.permute.xlu0 %400
        %402 = vrot.lane.b32.xlu0 %v397, 91
        %v403 = vpop.permute.xlu0 %402
        %vm404 = vcmask 744448
        %v405 = vsel %vm404, %v399, %v401
        %v406 = vsel %vm404, %v401, %v403
        %410 = vst [vmem:[#allocation2 + $0x48] sm:$0xf0] %v405
        %411 = vst [vmem:[#allocation2 + $0x50] sm:$0xf0] %v406
        %412 = vst.msk [vmem:[#allocation2 + $0x58] sm:$0xf0] %vm258, %v403
        %v413 = vld [vmem:[%s190] sm:$0xff]
        %v414 = vld [vmem:[%s190 + $0x8] sm:$0xf]
        %417 = vst [vmem:[#allocation1] ss:$2 sm:$0xff] %v413
        %s418 = scalar_lea.vmem [#allocation1], 16
        %419 = vst [vmem:[%s418] ss:$2 sm:$0xff] %v414
        %v420 = vld.sshfl [vmem:[#allocation1] sm:$0xff pattern:$0x75316420]
        %v421 = vld.sshfl [vmem:[#allocation1 + $0x8] sm:$0xff pattern:$0x75316420]
        %v422 = vld.sshfl [vmem:[#allocation1 + $0x10] sm:$0xff pattern:$0x75316420]
        %423 = vrot.lane.b32.xlu0 %v420, 90
        %v424 = vpop.permute.xlu0 %423
        %425 = vrot.lane.b32.xlu0 %v421, 90
        %v426 = vpop.permute.xlu0 %425
        %427 = vrot.lane.b32.xlu0 %v422, 90
        %v428 = vpop.permute.xlu0 %427
        %vm429 = vcmask 736256
        %v430 = vsel %vm429, %v424, %v426
        %v431 = vsel %vm429, %v426, %v428
        %435 = vst [vmem:[#allocation2 + $0x60] sm:$0xf] %v430
        %436 = vst [vmem:[#allocation2 + $0x68] sm:$0xf] %v431
        %437 = vst.msk [vmem:[#allocation2 + $0x70] sm:$0xf] %vm231, %v428
        %v438 = vld [vmem:[%s1] sm:$0xf]
        %v439 = vld [vmem:[#allocation2] sm:$0xff]
        %v440 = vld [vmem:[#allocation2 + $0x8] sm:$0xff]
        %v441 = vld [vmem:[#allocation2 + $0x10] sm:$0xff]
        %v442 = vld [vmem:[#allocation2 + $0x18] sm:$0xff]
        %v443 = vld [vmem:[#allocation2 + $0x20] sm:$0xff]
        %v444 = vld [vmem:[#allocation2 + $0x28] sm:$0xff]
        %v445 = vld [vmem:[#allocation2 + $0x30] sm:$0xff]
        %v446 = vld [vmem:[#allocation2 + $0x38] sm:$0xff]
        %v447 = vld [vmem:[#allocation2 + $0x40] sm:$0xff]
        %v448 = vld [vmem:[#allocation2 + $0x48] sm:$0xff]
        %v449 = vld [vmem:[#allocation2 + $0x50] sm:$0xff]
        %v450 = vld [vmem:[#allocation2 + $0x58] sm:$0xff]
        %v451 = vld [vmem:[#allocation2 + $0x60] sm:$0xf]
        %v452 = vld [vmem:[#allocation2 + $0x68] sm:$0xf]
        %v453 = vld [vmem:[#allocation2 + $0x70] sm:$0xf]
        %v454 = vld [vmem:[%s2] sm:$0xf]
        %456 = vset.pattern.permute.xlu0 0
        %457 = vperm.xlu0 %456, %v454
        %v458 = vpop.permute.xlu0 %457
        %vm460 = vcmask 293888
        %v462 = vsel %vm460, %v438, 0
        %vm464 = vcmask 1043456
        %v466 = vsel %vm464, %v451, 0
        %v469 = vsel %vm464, %v452, 0
        %v472 = vsel %vm464, %v453, 0
        %474 = vmatpush.msra.mxu0 0.0
        %475 = vmatpush.msra.mxu0 0.0
        %476 = vmatpush.msra.mxu0 0.0
        %477 = vmatpush.msra.mxu0 0.0
        %478 = vmatpush.msra.mxu0 0.0
        %479 = vmatpush.msra.mxu0 0.0
        %480 = vmatpush.msra.mxu0 0.0
        %481 = vmatpush.msra.mxu0 0.0
        %482 = vmatpush.msra.mxu0 0.0
        %483 = vmatpush.msra.mxu0 0.0
        %484 = vmatpush.msra.mxu0 0.0
        %485 = vmatpush.msra.mxu0 %v466
        %486 = vmatpush.msra.mxu0 %v448
        %487 = vmatpush.msra.mxu0 %v445
        %488 = vmatpush.msra.mxu0 %v442
        %489 = vmatpush.msra.mxu0 %v439
        %490 = vmatmul.f32.gmra.mxu0 %v462
        %v491 = vpop.f32.mrf.mxu0
        %v492 = vadd.f32 %v458, %v491
        %493 = vdwg.mxu0
        %494 = vmatpush.msra.mxu0 0.0
        %495 = vmatpush.msra.mxu0 0.0
        %496 = vmatpush.msra.mxu0 0.0
        %497 = vmatpush.msra.mxu0 0.0
        %498 = vmatpush.msra.mxu0 0.0
        %499 = vmatpush.msra.mxu0 0.0
        %500 = vmatpush.msra.mxu0 0.0
        %501 = vmatpush.msra.mxu0 0.0
        %502 = vmatpush.msra.mxu0 0.0
        %503 = vmatpush.msra.mxu0 0.0
        %504 = vmatpush.msra.mxu0 0.0
        %505 = vmatpush.msra.mxu0 %v469
        %506 = vmatpush.msra.mxu0 %v449
        %507 = vmatpush.msra.mxu0 %v446
        %508 = vmatpush.msra.mxu0 %v443
        %509 = vmatpush.msra.mxu0 %v440
        %510 = vmatmul.f32.gmra.mxu0 %v462
        %v511 = vpop.f32.mrf.mxu0
        %v512 = vadd.f32 %v458, %v511
        %513 = vdwg.mxu0
        %514 = vmatpush.msra.mxu0 0.0
        %515 = vmatpush.msra.mxu0 0.0
        %516 = vmatpush.msra.mxu0 0.0
        %517 = vmatpush.msra.mxu0 0.0
        %518 = vmatpush.msra.mxu0 0.0
        %519 = vmatpush.msra.mxu0 0.0
        %520 = vmatpush.msra.mxu0 0.0
        %521 = vmatpush.msra.mxu0 0.0
        %522 = vmatpush.msra.mxu0 0.0
        %523 = vmatpush.msra.mxu0 0.0
        %524 = vmatpush.msra.mxu0 0.0
        %525 = vmatpush.msra.mxu0 %v472
        %526 = vmatpush.msra.mxu0 %v450
        %527 = vmatpush.msra.mxu0 %v447
        %528 = vmatpush.msra.mxu0 %v444
        %529 = vmatpush.msra.mxu0 %v441
        %530 = vmatmul.f32.gmra.mxu0 %v462
        %v531 = vpop.f32.mrf.mxu0
        %v532 = vadd.f32 %v458, %v531
        %533 = vdwg.mxu0
        %v534 = vmax.f32 %v492, 0.0
        %v535 = vmax.f32 %v512, 0.0
        %v536 = vmax.f32 %v532, 0.0
        %v537 = vld [vmem:[%s3] sm:$0x7]
        %v539 = vperm.slane %v537, 0
        %v540 = vperm.slane %v537, 1
        %v541 = vperm.slane %v537, 2
        %v545 = vmul.f32 %v534, %v539
        %v546 = vmul.f32 %v535, %v540
        %v547 = vmul.f32 %v536, %v541
        %v548 = vsel %vm464, %v545, 0.0
        %v549 = vsel %vm464, %v546, 0.0
        %v550 = vadd.f32 %v548, %v549
        %v551 = vsel %vm231, %v547, 0.0
        %v552 = vadd.f32 %v550, %v551
        %553 = vadd.xlane.f32.xlu0 %v552
        %v554 = vpop.xlane.xlu0 %553
        %v555 = vmul.f32 %v554, 0.00390625
        %v556 = vmul.f32 %v545, %v545
        %v557 = vmul.f32 %v546, %v546
        %v558 = vmul.f32 %v547, %v547
        %v559 = vsel %vm464, %v556, 0.0
        %v560 = vsel %vm464, %v557, 0.0
        %v561 = vadd.f32 %v559, %v560
        %v562 = vsel %vm231, %v558, 0.0
        %v563 = vadd.f32 %v561, %v562
        %564 = vadd.xlane.f32.xlu0 %v563
        %v565 = vpop.xlane.xlu0 %564
        %v566 = vmul.f32 %v565, 0.00390625
        %v567 = vmul.f32 %v555, %v555
        %v568 = vsub.f32 %v566, %v567
        %v569 = vmax.f32 %v568, 0.0
        %v570 = vadd.f32 %v569, 1e-05
        %v571 = vrsqrt.pop %v570
        %v572 = vmul.f32 %v571, %v570
        %v573 = vmul.f32 %v572, %v571
        %v574 = vmul.f32 0.5, %v573
        %v575 = vsub.f32 1.5, %v574
        %v576 = vmul.f32 %v571, %v575
        %vm577 = vweird.f32 %v570
        %vm578 = vweird.f32 %v571
        %vm579 = vmor %vm577, %vm578
        %v580 = vsel %vm579, %v571, %v576
        %v581 = vmul.f32 %v534, %v580
        %v582 = vmul.f32 %v535, %v580
        %v583 = vmul.f32 %v536, %v580
        %v584 = vmul.f32 %v555, %v580
        %v585 = vsub.f32 %v581, %v584
        %v586 = vsub.f32 %v582, %v584
        %v587 = vsub.f32 %v583, %v584
        %v590 = vrot.slane %v586, 4
        %v591 = vsel %vm464, %v585, %v590
        %593 = vst [vmem:[%s215] sm:$0xff] %v591
        %594 = vst.msk [vmem:[%s215 + $0x8] sm:$0xf] %vm231, %v587
        %s595 = sand.u32 %s118, 1
        %s596 = scalar_lea.sflag [#allocation5], %s595
        %s597 = sand.u32 %s118, 1
        %s598 = smul.addr %s597, 12
        %s599 = scalar_lea.vmem [#allocation6], %s598
        // Predicated region
        $region41: #{tpu_custom_call.1} parent=35 // pred_check
          %p600 = pneg %p128
        $region42: #{tpu_custom_call.1} parent=35 // pred_check_branch
          %602 = sbr.rel (%p600) target = $region44
        $region43: #{tpu_custom_call.1} parent=35 // pred_region
          %604 = vsyncadd %s596, 0
          %s605 = smul.addr %s21, 3
          %s606 = smul.addr %s605, 4
          %s607 = scalar_lea.hbm %s4, %s606
          %s609 = sshll.u32 %s599, 4
          %s610 = int_to_ptr.vmem [resolvable:$true] %s609
          %s611 = sshll.u32 %s607, 4
          %s612 = int_to_ptr.hbm [resolvable:$true] %s611
          %614 = dma.vmem_to_hbm [thread:$0]  %s610, 192, %s612, %s596
        $region44: #{tpu_custom_call.1} parent=35 // pred_fallthru
          _
      $region36: #{tpu_custom_call.1} parent=5 // pred_fallthru
        _
      %p615 = scmp.le.s32.totalorder 2, %s16
      // Predicated region
      $region45: #{tpu_custom_call.1} parent=5 // pred_check
        %p616 = pneg %p615
      $region46: #{tpu_custom_call.1} parent=5 // pred_check_branch
        %618 = sbr.rel (%p616) target = $region48
      $region47: #{tpu_custom_call.1} parent=5 // pred_region
        %s619 = ssub.s32 %s16, 2
        // Predicated region
        $region49: #{tpu_custom_call.1} parent=47 // pred_check
          %p620 = pneg %p134
        $region50: #{tpu_custom_call.1} parent=47 // pred_check_branch
          %622 = sbr.rel (%p620) target = $region52
        $region51: #{tpu_custom_call.1} parent=47 // pred_region
          %s623 = sand.u32 %s119, 1
          %s624 = scalar_lea.sflag [#allocation5], %s623
          %s625 = sand.u32 %s119, 1
          %s626 = smul.addr %s625, 12
          %s627 = scalar_lea.vmem [#allocation6], %s626
          %629 = dma.done %s624, 192
        $region52: #{tpu_custom_call.1} parent=47 // pred_fallthru
          _
      $region48: #{tpu_custom_call.1} parent=5 // pred_fallthru
        _
    $region6: #{tpu_custom_call.1} parent=1 // loop_footer
      %s20 = sadd.s32 1, %s16
    $region7: #{tpu_custom_call.1} parent=1 // loop_footer_branch
      %15 = sbr.rel target = $region3
    $region8: #{tpu_custom_call.1} parent=1 // loop_exit
      _
    %630 = vsyncpa [#allocation4], 1
    %s631 = scalar_lea.sflag [#allocation4], 1
    %632 = vsyncpa %s631, 1
    %633 = vsyncpa [#allocation5], 1
    %s634 = scalar_lea.sflag [#allocation5], 1
    %635 = vsyncpa %s634, 1

</llo_original>
